<compile_context>
chip_gen: v7x
topology: tpu7x:2x2x1
jax: 0.10.0
libtpu: 0.0.40
codegen_flags: <defaults>
</compile_context>

<pallas_src>
import jax
import jax.numpy as jnp
import numpy as np
from jax.experimental import pallas as pl
from jax.experimental.pallas import tpu as pltpu

NUM_CTX = 5  # order: [global, pprev, prev, next, nnext]
_LANE = 128


# TODO(synk): DeepEncoder's definition is not included in the provided source;
# it is implemented here as a 2-layer MLP (Linear -> ReLU -> Linear) applied on
# the channel (last) dimension, which matches its in_dim->dim signature.
def _encoder_ctx_kernel(x_ref, w1_ref, b1_ref, w2_ref, b2_ref,
                        wc_ref, bc_ref, enc_ref, ctx_ref):
    tg, n, k = x_ref.shape           # TG groups x N tokens x padded in_dim
    c = w2_ref.shape[1]              # padded channel dim

    # DeepEncoder: Linear -> ReLU -> Linear on a tall (TG*N, K) LHS.
    x = x_ref[...].reshape(tg * n, k)
    h = jnp.dot(x, w1_ref[...], preferred_element_type=jnp.float32) + b1_ref[...]
    h = jnp.maximum(h, 0.0)
    enc = jnp.dot(h, w2_ref[...], preferred_element_type=jnp.float32) + b2_ref[...]
    enc3 = enc.reshape(tg, n, c)
    enc_ref[...] = enc3.astype(enc_ref.dtype)                    # (TG, N, C)

    # mean-before-linear (exact): mean_N(enc @ W + b) == mean_N(enc) @ W + b.
    enc_mean = jnp.mean(enc3, axis=1)                            # (TG, C)
    # 5 context linears fused into one lane-dense matmul.
    ctx = jnp.dot(enc_mean, wc_ref[...],
                  preferred_element_type=jnp.float32) + bc_ref[...]   # (TG, 5*C)
    ctx_ref[...] = ctx.astype(ctx_ref.dtype)


def _round_up(v, m):
    return ((v + m - 1) // m) * m


def temporal_encoder_global(x, params, *, rows_per_step=256):
    """x: (B, G, N, in_dim) float32 -> (B, G, N + 5, dim) float32."""
    B, G, N, in_dim = x.shape
    C = params["enc_w2"].shape[1]
    K_p = _round_up(in_dim, _LANE)
    C_p = _round_up(C, _LANE)
    BG = B * G

    # groups per grid step: fill the MXU M dimension (TG*N rows >= ~256).
    tg = min(BG, max(1, pl.cdiv(rows_per_step, N)))
    if tg < BG:
        tg = min(BG, _round_up(tg, 8))   # keep ctx block sublane-aligned
    bg_p = _round_up(BG, tg)
    n_steps = bg_p // tg

    def pad2(w, r, c):
        return jnp.pad(w, ((0, r - w.shape[0]), (0, c - w.shape[1])))

    def pad1(b, c):
        return jnp.pad(b, (0, c - b.shape[0])).reshape(1, c)

    ctx_names = ("global", "pprev", "prev", "next", "nnext")
    w1 = pad2(params["enc_w1"], K_p, C_p)
    b1 = pad1(params["enc_b1"], C_p)
    w2 = pad2(params["enc_w2"], C_p, C_p)
    b2 = pad1(params["enc_b2"], C_p)
    wc = jnp.concatenate([pad2(params["w_" + n], C_p, C_p) for n in ctx_names],
                         axis=1)                                  # (C_p, 5*C_p)
    bc = jnp.concatenate([pad1(params["b_" + n], C_p) for n in ctx_names],
                         axis=1)                                  # (1, 5*C_p)

    xg = x.reshape(BG, N, in_dim)
    xg = jnp.pad(xg, ((0, bg_p - BG), (0, 0), (0, K_p - in_dim)))

    enc_p, ctx_p = pl.pallas_call(
        _encoder_ctx_kernel,
        out_shape=(jax.ShapeDtypeStruct((bg_p, N, C_p), jnp.float32),
                   jax.ShapeDtypeStruct((bg_p, NUM_CTX * C_p), jnp.float32)),
        grid=(n_steps,),
        in_specs=[
            pl.BlockSpec((tg, N, K_p), lambda i: (i, 0, 0)),
            pl.BlockSpec((K_p, C_p), lambda i: (0, 0)),
            pl.BlockSpec((1, C_p), lambda i: (0, 0)),
            pl.BlockSpec((C_p, C_p), lambda i: (0, 0)),
            pl.BlockSpec((1, C_p), lambda i: (0, 0)),
            pl.BlockSpec((C_p, NUM_CTX * C_p), lambda i: (0, 0)),
            pl.BlockSpec((1, NUM_CTX * C_p), lambda i: (0, 0)),
        ],
        out_specs=(
            pl.BlockSpec((tg, N, C_p), lambda i: (i, 0, 0)),
            pl.BlockSpec((tg, NUM_CTX * C_p), lambda i: (i, 0)),
        ),
        compiler_params=pltpu.CompilerParams(
            dimension_semantics=("parallel",)),
    )(xg, w1, b1, w2, b2, wc, bc)

    enc = enc_p[:BG, :, :C].reshape(B, G, N, C)
    ctx = ctx_p[:BG].reshape(B, G, NUM_CTX, C_p)[..., :C]        # (B, G, 5, C)

    # ---- glue: cross-group roll / zero / global mean / concat (plain JAX) ----
    g_ctx = jnp.mean(ctx[:, :, 0, :], axis=1)                    # (B, C)
    g_ctx = jnp.broadcast_to(g_ctx[:, None, None, :], (B, G, 1, C))

    def directional(idx, shift, empties):
        f = ctx[:, :, idx, :]                                    # (B, G, C)
        f = jnp.roll(f, shift, axis=1)
        for e in empties:
            size = e + 1 if e >= 0 else -e
            if G >= size:
                f = f.at[:, e].set(0.0)
        return f[:, :, None, :]                                  # (B, G, 1, C)

    pprev = directional(1, 2, [0, 1])
    prev = directional(2, 1, [0])
    nxt = directional(3, -1, [-1])
    nnext = directional(4, -2, [-2, -1])

    # order matches the torch forward: [global, pprev, prev, next, nnext, feature]
    return jnp.concatenate([g_ctx, pprev, prev, nxt, nnext, enc], axis=-2)


def init_params(key, in_dim, dim):
    """Deterministic torch-nn.Linear-style init (uniform +/- 1/sqrt(fan_in))."""
    names = [("enc_w1", "enc_b1", in_dim, dim), ("enc_w2", "enc_b2", dim, dim),
             ("w_global", "b_global", dim, dim), ("w_pprev", "b_pprev", dim, dim),
             ("w_prev", "b_prev", dim, dim), ("w_next", "b_next", dim, dim),
             ("w_nnext", "b_nnext", dim, dim)]
    keys = jax.random.split(key, 2 * len(names))
    params = {}
    for i, (wn, bn, fi, fo) in enumerate(names):
        bound = 1.0 / np.sqrt(fi)
        params[wn] = jax.random.uniform(keys[2 * i], (fi, fo), jnp.float32,
                                        -bound, bound)
        params[bn] = jax.random.uniform(keys[2 * i + 1], (fo,), jnp.float32,
                                        -bound, bound)
    return params


def reference(x, params):
    """Pure-JAX reference mirroring the torch forward semantics."""
    B, G, N, _ = x.shape
    C = params["enc_w2"].shape[1]
    h = jnp.maximum(x @ params["enc_w1"] + params["enc_b1"], 0.0)
    enc = h @ params["enc_w2"] + params["enc_b2"]                 # (B, G, N, C)

    def lin_mean(w, b):
        return jnp.mean(enc @ w + b, axis=-2)                     # (B, G, C)

    g = jnp.mean(lin_mean(params["w_global"], params["b_global"]), axis=-2)
    g = jnp.broadcast_to(g[:, None, None, :], (B, G, 1, C))

    def build(name, shift, empties):
        f = lin_mean(params["w_" + name], params["b_" + name])
        f = jnp.roll(f, shift, axis=1)
        for e in empties:
            size = e + 1 if e >= 0 else -e
            if G >= size:
                f = f.at[:, e].set(0.0)
        return f[:, :, None, :]

    fs = [g, build("pprev", 2, [0, 1]), build("prev", 1, [0]),
          build("next", -1, [-1]), build("nnext", -2, [-2, -1]), enc]
    return jnp.concatenate(fs, axis=-2)


if __name__ == "__main__":
    B, G, N, in_dim, dim = 2, 4, 8, 16, 32
    key = jax.random.PRNGKey(0)
    kx, kp = jax.random.split(key)
    x = jax.random.normal(kx, (B, G, N, in_dim), dtype=jnp.float32)
    params = init_params(kp, in_dim, dim)

    out = temporal_encoder_global(x, params)
    out = jax.block_until_ready(out)

    ref = jax.block_until_ready(reference(x, params))
    assert out.shape == (B, G, N + 5, dim), out.shape
    np.testing.assert_allclose(np.asarray(out), np.asarray(ref),
                               rtol=1e-4, atol=1e-4)
    print("KERNEL_OK")
</pallas_src>

<mosaic_0001>
module attributes {stable_mosaic.version = 11 : i64} {
  func.func @_encoder_ctx_kernel(%arg0: i32, %arg1: memref<8x8x128xf32, #tpu.memory_space<vmem>>, %arg2: memref<128x128xf32, #tpu.memory_space<vmem>>, %arg3: memref<1x128xf32, #tpu.memory_space<vmem>>, %arg4: memref<128x128xf32, #tpu.memory_space<vmem>>, %arg5: memref<1x128xf32, #tpu.memory_space<vmem>>, %arg6: memref<128x640xf32, #tpu.memory_space<vmem>>, %arg7: memref<1x640xf32, #tpu.memory_space<vmem>>, %arg8: memref<8x8x128xf32, #tpu.memory_space<vmem>>, %arg9: memref<8x640xf32, #tpu.memory_space<vmem>>) attributes {dimension_semantics = [#tpu.dimension_semantics<parallel>], iteration_bounds = array<i64: 1>, scalar_prefetch = 0 : i64, scratch_operands = 0 : i64, tpu.core_type = #tpu.core_type<tc>, window_params = [{transform_indices = @transform_0, window_bounds = array<i64: 8, 8, 128>}, {pipeline_mode = #tpu.pipeline_mode<synchronous>, transform_indices = @transform_1, window_bounds = array<i64: 128, 128>}, {pipeline_mode = #tpu.pipeline_mode<synchronous>, transform_indices = @transform_2, window_bounds = array<i64: 1, 128>}, {pipeline_mode = #tpu.pipeline_mode<synchronous>, transform_indices = @transform_3, window_bounds = array<i64: 128, 128>}, {pipeline_mode = #tpu.pipeline_mode<synchronous>, transform_indices = @transform_4, window_bounds = array<i64: 1, 128>}, {pipeline_mode = #tpu.pipeline_mode<synchronous>, transform_indices = @transform_5, window_bounds = array<i64: 128, 640>}, {pipeline_mode = #tpu.pipeline_mode<synchronous>, transform_indices = @transform_6, window_bounds = array<i64: 1, 640>}, {transform_indices = @transform_7, window_bounds = array<i64: 8, 8, 128>}, {transform_indices = @transform_8, window_bounds = array<i64: 8, 640>}]} {
    %c0 = arith.constant 0 : index
    %c0_0 = arith.constant 0 : index
    %c0_1 = arith.constant 0 : index
    %0 = vector.load %arg1[%c0, %c0_0, %c0_1] : memref<8x8x128xf32, #tpu.memory_space<vmem>>, vector<8x8x128xf32>
    %1 = vector.shape_cast %0 : vector<8x8x128xf32> to vector<64x128xf32>
    %c0_2 = arith.constant 0 : index
    %c0_3 = arith.constant 0 : index
    %2 = vector.load %arg2[%c0_2, %c0_3] : memref<128x128xf32, #tpu.memory_space<vmem>>, vector<128x128xf32>
    %cst = arith.constant dense<0.000000e+00> : vector<64x128xf32>
    %3 = tpu.matmul %1, %2, %cst {dimension_numbers = #tpu.dot_dimension_numbers<[1], [0], [0], [1], [0, 0, 1, 1], [], []>} : vector<64x128xf32>, vector<128x128xf32>, vector<64x128xf32> -> vector<64x128xf32>
    %c0_4 = arith.constant 0 : index
    %c0_5 = arith.constant 0 : index
    %4 = vector.load %arg3[%c0_4, %c0_5] : memref<1x128xf32, #tpu.memory_space<vmem>>, vector<1x128xf32>
    %5 = vector.broadcast %4 : vector<1x128xf32> to vector<64x128xf32>
    %6 = arith.addf %3, %5 : vector<64x128xf32>
    %cst_6 = arith.constant 0.000000e+00 : f32
    %7 = vector.broadcast %cst_6 : f32 to vector<64x128xf32>
    %8 = arith.maximumf %6, %7 : vector<64x128xf32>
    %c0_7 = arith.constant 0 : index
    %c0_8 = arith.constant 0 : index
    %9 = vector.load %arg4[%c0_7, %c0_8] : memref<128x128xf32, #tpu.memory_space<vmem>>, vector<128x128xf32>
    %cst_9 = arith.constant dense<0.000000e+00> : vector<64x128xf32>
    %10 = tpu.matmul %8, %9, %cst_9 {dimension_numbers = #tpu.dot_dimension_numbers<[1], [0], [0], [1], [0, 0, 1, 1], [], []>} : vector<64x128xf32>, vector<128x128xf32>, vector<64x128xf32> -> vector<64x128xf32>
    %c0_10 = arith.constant 0 : index
    %c0_11 = arith.constant 0 : index
    %11 = vector.load %arg5[%c0_10, %c0_11] : memref<1x128xf32, #tpu.memory_space<vmem>>, vector<1x128xf32>
    %12 = vector.broadcast %11 : vector<1x128xf32> to vector<64x128xf32>
    %13 = arith.addf %10, %12 : vector<64x128xf32>
    %14 = vector.shape_cast %13 : vector<64x128xf32> to vector<8x8x128xf32>
    %c0_12 = arith.constant 0 : index
    %c0_13 = arith.constant 0 : index
    %c0_14 = arith.constant 0 : index
    %15 = vector.load %arg8[%c0_12, %c0_13, %c0_14] : memref<8x8x128xf32, #tpu.memory_space<vmem>>, vector<8x8x128xf32>
    tpu.vector_store %arg8[%c0_12, %c0_13, %c0_14], %14 {strides = array<i32>} : memref<8x8x128xf32, #tpu.memory_space<vmem>>, vector<8x8x128xf32>,
    %cst_15 = arith.constant dense<0.000000e+00> : vector<8x128xf32>
    %16 = vector.multi_reduction <add>, %14, %cst_15 [1] : vector<8x8x128xf32> to vector<8x128xf32>
    %cst_16 = arith.constant 8.000000e+00 : f32
    %17 = vector.broadcast %cst_16 : f32 to vector<8x128xf32>
    %18 = arith.divf %16, %17 : vector<8x128xf32>
    %c0_17 = arith.constant 0 : index
    %c0_18 = arith.constant 0 : index
    %19 = vector.load %arg6[%c0_17, %c0_18] : memref<128x640xf32, #tpu.memory_space<vmem>>, vector<128x640xf32>
    %cst_19 = arith.constant dense<0.000000e+00> : vector<8x640xf32>
    %20 = tpu.matmul %18, %19, %cst_19 {dimension_numbers = #tpu.dot_dimension_numbers<[1], [0], [0], [1], [0, 0, 1, 1], [], []>} : vector<8x128xf32>, vector<128x640xf32>, vector<8x640xf32> -> vector<8x640xf32>
    %c0_20 = arith.constant 0 : index
    %c0_21 = arith.constant 0 : index
    %21 = vector.load %arg7[%c0_20, %c0_21] : memref<1x640xf32, #tpu.memory_space<vmem>>, vector<1x640xf32>
    %22 = vector.broadcast %21 : vector<1x640xf32> to vector<8x640xf32>
    %23 = arith.addf %20, %22 : vector<8x640xf32>
    %c0_22 = arith.constant 0 : index
    %c0_23 = arith.constant 0 : index
    %24 = vector.load %arg9[%c0_22, %c0_23] : memref<8x640xf32, #tpu.memory_space<vmem>>, vector<8x640xf32>
    tpu.vector_store %arg9[%c0_22, %c0_23], %23 {strides = array<i32>} : memref<8x640xf32, #tpu.memory_space<vmem>>, vector<8x640xf32>,
    return
  }
  func.func @transform_0(%arg0: i32) -> (i32, i32, i32) {
    %c0_i32 = arith.constant 0 : i32
    %c0_i32_0 = arith.constant 0 : i32
    %c0_i32_1 = arith.constant 0 : i32
    return %arg0, %c0_i32, %c0_i32_0 : i32, i32, i32
  }
  func.func @transform_1(%arg0: i32) -> (i32, i32) {
    %c0_i32 = arith.constant 0 : i32
    %c0_i32_0 = arith.constant 0 : i32
    %c0_i32_1 = arith.constant 0 : i32
    return %c0_i32, %c0_i32_0 : i32, i32
  }
  func.func @transform_2(%arg0: i32) -> (i32, i32) {
    %c0_i32 = arith.constant 0 : i32
    %c0_i32_0 = arith.constant 0 : i32
    %c0_i32_1 = arith.constant 0 : i32
    return %c0_i32, %c0_i32_0 : i32, i32
  }
  func.func @transform_3(%arg0: i32) -> (i32, i32) {
    %c0_i32 = arith.constant 0 : i32
    %c0_i32_0 = arith.constant 0 : i32
    %c0_i32_1 = arith.constant 0 : i32
    return %c0_i32, %c0_i32_0 : i32, i32
  }
  func.func @transform_4(%arg0: i32) -> (i32, i32) {
    %c0_i32 = arith.constant 0 : i32
    %c0_i32_0 = arith.constant 0 : i32
    %c0_i32_1 = arith.constant 0 : i32
    return %c0_i32, %c0_i32_0 : i32, i32
  }
  func.func @transform_5(%arg0: i32) -> (i32, i32) {
    %c0_i32 = arith.constant 0 : i32
    %c0_i32_0 = arith.constant 0 : i32
    %c0_i32_1 = arith.constant 0 : i32
    return %c0_i32, %c0_i32_0 : i32, i32
  }
  func.func @transform_6(%arg0: i32) -> (i32, i32) {
    %c0_i32 = arith.constant 0 : i32
    %c0_i32_0 = arith.constant 0 : i32
    %c0_i32_1 = arith.constant 0 : i32
    return %c0_i32, %c0_i32_0 : i32, i32
  }
  func.func @transform_7(%arg0: i32) -> (i32, i32, i32) {
    %c0_i32 = arith.constant 0 : i32
    %c0_i32_0 = arith.constant 0 : i32
    %c0_i32_1 = arith.constant 0 : i32
    return %arg0, %c0_i32, %c0_i32_0 : i32, i32, i32
  }
  func.func @transform_8(%arg0: i32) -> (i32, i32) {
    %c0_i32 = arith.constant 0 : i32
    %c0_i32_0 = arith.constant 0 : i32
    return %arg0, %c0_i32 : i32, i32
  }
}

</mosaic_0001>

<llo_original>
// kernel: tpu_custom_call.1
$region0: #{tpu_custom_call.1}
  #allocation0 [shape = 'u32[]', space=smem, size = 0x4, offset = 0x4, fixed_abs, tag = 'smem constant byte address 0x4 - core index']
  #allocation1 [shape = 'u32[144,128]{1,0:T(1,128)}', space=vmem, size = 0x12000, scoped, tag = 'internal scratch']
  %s0 = inlined_call_operand.hbm [shape: f32[8,8,128], index: 0, kind: input, shape index: {}]
  %s1 = inlined_call_operand.hbm [shape: f32[128,128], index: 1, kind: input, shape index: {}]
  %s2 = inlined_call_operand.vmem [shape: f32[1,128], index: 2, kind: input, shape index: {}]
  %s3 = inlined_call_operand.hbm [shape: f32[128,128], index: 3, kind: input, shape index: {}]
  %s4 = inlined_call_operand.vmem [shape: f32[1,128], index: 4, kind: input, shape index: {}]
  %s5 = inlined_call_operand.hbm [shape: f32[128,640], index: 5, kind: input, shape index: {}]
  %s6 = inlined_call_operand.vmem [shape: f32[1,640], index: 6, kind: input, shape index: {}]
  %s7 = inlined_call_operand.hbm [shape: f32[8,8,128], index: 7, kind: output, shape index: {0}]
  %s8 = inlined_call_operand.hbm [shape: f32[8,640], index: 8, kind: output, shape index: {1}]
  %9 = xla_tuple %s7, %s8
  %s10 = sld [smem:[#allocation0]]
  $region62: #{tpu_custom_call.1} parent=0
    _
  %s12 = ssub.s32 1, %s10
  %s13 = scalar_select 0, %s12, %s10
  $region1: #{tpu_custom_call.1} parent=0
    #allocation2 [shape = 'u8[32768]{0}', space=vmem, size = 0x8000, scoped, tag = 'input window, operand 0, single buffered']
    #allocation3 [shape = 's32[1]{0}', space=sflag, size = 0x4, scoped, tag = 'scoped memory for tpu_custom_call.1']
    #allocation4 [shape = 's32[1]{0}', space=sflag, size = 0x4, scoped, tag = 'scoped memory for tpu_custom_call.1']
    #allocation5 [shape = 'u8[65536]{0}', space=vmem, size = 0x10000, scoped, tag = 'input window, operand 1, single buffered']
    #allocation6 [shape = 's32[1]{0}', space=sflag, size = 0x4, scoped, tag = 'scoped memory for tpu_custom_call.1']
    #allocation7 [shape = 'u8[65536]{0}', space=vmem, size = 0x10000, scoped, tag = 'input window, operand 3, single buffered']
    #allocation8 [shape = 'u8[327680]{0}', space=vmem, size = 0x50000, scoped, tag = 'input window, operand 5, single buffered']
    #allocation9 [shape = 's32[1]{0}', space=sflag, size = 0x4, scoped, tag = 'scoped memory for tpu_custom_call.1']
    #allocation10 [shape = 'u8[32768]{0}', space=vmem, size = 0x8000, scoped, tag = 'output window, operand 0, single buffered']
    #allocation11 [shape = 'u8[20480]{0}', space=vmem, size = 0x5000, scoped, tag = 'output window, operand 1, single buffered']
    #allocation12 [shape = 's32[1]{0}', space=sflag, size = 0x4, scoped, tag = 'scoped memory for tpu_custom_call.1']
    %14 = vsyncpa [#allocation3], 0
    %15 = vsyncpa [#allocation6], 0
    %16 = vsyncpa [#allocation9], 0
    %17 = vsyncpa [#allocation4], 0
    %18 = vsyncpa [#allocation12], 0
    // Predicated region
    $region2: #{tpu_custom_call.1} parent=1 // pred_check
      _
    $region3: #{tpu_custom_call.1} parent=1 // pred_check_branch
      %20 = sbr.rel (0) target = $region5
    $region4: #{tpu_custom_call.1} parent=1 // pred_region
      %s22 = ssub.s32 1024, 1024
      %23 = vsyncadd [#allocation3], %s22
      %s24 = sshll.u32 [#allocation2], 4
      %s25 = int_to_ptr.vmem [resolvable:$true] %s24
      %30 = dma.hbm_to_vmem [thread:$0]  %s0, 1024, %s25, [#allocation3], 128, 128, 8
    $region5: #{tpu_custom_call.1} parent=1 // pred_fallthru
      _
    // Predicated region
    $region6: #{tpu_custom_call.1} parent=1 // pred_check
      _
    $region7: #{tpu_custom_call.1} parent=1 // pred_check_branch
      %32 = sbr.rel (0) target = $region9
    $region8: #{tpu_custom_call.1} parent=1 // pred_region
      %s34 = ssub.s32 2048, 2048
      %35 = vsyncadd [#allocation6], %s34
      %s36 = sshll.u32 [#allocation5], 4
      %s37 = int_to_ptr.vmem [resolvable:$true] %s36
      %42 = dma.hbm_to_vmem [thread:$0]  %s1, 2048, %s37, [#allocation6], 128, 128, 8
    $region9: #{tpu_custom_call.1} parent=1 // pred_fallthru
      _
    // Predicated region
    $region10: #{tpu_custom_call.1} parent=1 // pred_check
      _
    $region11: #{tpu_custom_call.1} parent=1 // pred_check_branch
      %44 = sbr.rel (0) target = $region13
    $region12: #{tpu_custom_call.1} parent=1 // pred_region
      _
    $region13: #{tpu_custom_call.1} parent=1 // pred_fallthru
      _
    // Predicated region
    $region14: #{tpu_custom_call.1} parent=1 // pred_check
      _
    $region15: #{tpu_custom_call.1} parent=1 // pred_check_branch
      %46 = sbr.rel (0) target = $region17
    $region16: #{tpu_custom_call.1} parent=1 // pred_region
      %s48 = ssub.s32 2048, 2048
      %49 = vsyncadd [#allocation6], %s48
      %s50 = sshll.u32 [#allocation7], 4
      %s51 = int_to_ptr.vmem [resolvable:$true] %s50
      %56 = dma.hbm_to_vmem [thread:$0]  %s3, 2048, %s51, [#allocation6], 128, 128, 8
    $region17: #{tpu_custom_call.1} parent=1 // pred_fallthru
      _
    // Predicated region
    $region18: #{tpu_custom_call.1} parent=1 // pred_check
      _
    $region19: #{tpu_custom_call.1} parent=1 // pred_check_branch
      %58 = sbr.rel (0) target = $region21
    $region20: #{tpu_custom_call.1} parent=1 // pred_region
      _
    $region21: #{tpu_custom_call.1} parent=1 // pred_fallthru
      _
    // Predicated region
    $region22: #{tpu_custom_call.1} parent=1 // pred_check
      _
    $region23: #{tpu_custom_call.1} parent=1 // pred_check_branch
      %60 = sbr.rel (0) target = $region25
    $region24: #{tpu_custom_call.1} parent=1 // pred_region
      %s62 = ssub.s32 10240, 10240
      %63 = vsyncadd [#allocation9], %s62
      %s64 = sshll.u32 [#allocation8], 4
      %s65 = int_to_ptr.vmem [resolvable:$true] %s64
      %70 = dma.hbm_to_vmem [thread:$0]  %s5, 10240, %s65, [#allocation9], 640, 640, 40
    $region25: #{tpu_custom_call.1} parent=1 // pred_fallthru
      _
    // Predicated region
    $region26: #{tpu_custom_call.1} parent=1 // pred_check
      _
    $region27: #{tpu_custom_call.1} parent=1 // pred_check_branch
      %72 = sbr.rel (0) target = $region29
    $region28: #{tpu_custom_call.1} parent=1 // pred_region
      _
    $region29: #{tpu_custom_call.1} parent=1 // pred_fallthru
      _
    // Predicated region
    $region30: #{tpu_custom_call.1} parent=1 // pred_check
      _
    $region31: #{tpu_custom_call.1} parent=1 // pred_check_branch
      %74 = sbr.rel (0) target = $region33
    $region32: #{tpu_custom_call.1} parent=1 // pred_region
      %75 = dma.done [#allocation3], 1024
    $region33: #{tpu_custom_call.1} parent=1 // pred_fallthru
      _
    // Predicated region
    $region34: #{tpu_custom_call.1} parent=1 // pred_check
      _
    $region35: #{tpu_custom_call.1} parent=1 // pred_check_branch
      %77 = sbr.rel (0) target = $region37
    $region36: #{tpu_custom_call.1} parent=1 // pred_region
      %78 = dma.done [#allocation6], 2048
    $region37: #{tpu_custom_call.1} parent=1 // pred_fallthru
      _
    // Predicated region
    $region38: #{tpu_custom_call.1} parent=1 // pred_check
      _
    $region39: #{tpu_custom_call.1} parent=1 // pred_check_branch
      %80 = sbr.rel (0) target = $region41
    $region40: #{tpu_custom_call.1} parent=1 // pred_region
      %81 = dma.done [#allocation6], 2048
    $region41: #{tpu_custom_call.1} parent=1 // pred_fallthru
      _
    // Predicated region
    $region42: #{tpu_custom_call.1} parent=1 // pred_check
      _
    $region43: #{tpu_custom_call.1} parent=1 // pred_check_branch
      %83 = sbr.rel (0) target = $region45
    $region44: #{tpu_custom_call.1} parent=1 // pred_region
      %84 = dma.done [#allocation9], 10240
    $region45: #{tpu_custom_call.1} parent=1 // pred_fallthru
      _
    %v85 = vld [vmem:[#allocation2] sm:$0xff]
    %v86 = vld [vmem:[#allocation2 + $0x8] sm:$0xff]
    %v87 = vld [vmem:[#allocation2 + $0x10] sm:$0xff]
    %v88 = vld [vmem:[#allocation2 + $0x18] sm:$0xff]
    %v89 = vld [vmem:[#allocation2 + $0x20] sm:$0xff]
    %v90 = vld [vmem:[#allocation2 + $0x28] sm:$0xff]
    %v91 = vld [vmem:[#allocation2 + $0x30] sm:$0xff]
    %v92 = vld [vmem:[#allocation2 + $0x38] sm:$0xff]
    %v93 = vld [vmem:[#allocation5] sm:$0xff]
    %v94 = vld [vmem:[#allocation5 + $0x8] sm:$0xff]
    %v95 = vld [vmem:[#allocation5 + $0x10] sm:$0xff]
    %v96 = vld [vmem:[#allocation5 + $0x18] sm:$0xff]
    %v97 = vld [vmem:[#allocation5 + $0x20] sm:$0xff]
    %v98 = vld [vmem:[#allocation5 + $0x28] sm:$0xff]
    %v99 = vld [vmem:[#allocation5 + $0x30] sm:$0xff]
    %v100 = vld [vmem:[#allocation5 + $0x38] sm:$0xff]
    %v101 = vld [vmem:[#allocation5 + $0x40] sm:$0xff]
    %v102 = vld [vmem:[#allocation5 + $0x48] sm:$0xff]
    %v103 = vld [vmem:[#allocation5 + $0x50] sm:$0xff]
    %v104 = vld [vmem:[#allocation5 + $0x58] sm:$0xff]
    %v105 = vld [vmem:[#allocation5 + $0x60] sm:$0xff]
    %v106 = vld [vmem:[#allocation5 + $0x68] sm:$0xff]
    %v107 = vld [vmem:[#allocation5 + $0x70] sm:$0xff]
    %v108 = vld [vmem:[#allocation5 + $0x78] sm:$0xff]
    %v109 = vld [vmem:[%s2] sm:$0x1]
    %v111 = vlaneseq
    %v112 = vshrl.u32 %v111, 7
    %v113 = vsub.s32 0, %v112
    %v114 = vrot.slane %v109, %v113
    %116 = vmatprep.subr.mxu0 0.0
    %117 = vmatpush1.msra.mxu0 %v93
    %118 = vmatprep.subr.mxu0 0.0
    %119 = vmatpush1.msra.mxu0 %v94
    %120 = vmatprep.subr.mxu0 0.0
    %121 = vmatpush1.msra.mxu0 %v95
    %122 = vmatprep.subr.mxu0 0.0
    %123 = vmatpush1.msra.mxu0 %v96
    %124 = vmatprep.subr.mxu0 0.0
    %125 = vmatpush1.msra.mxu0 %v97
    %126 = vmatprep.subr.mxu0 0.0
    %127 = vmatpush1.msra.mxu0 %v98
    %128 = vmatprep.subr.mxu0 0.0
    %129 = vmatpush1.msra.mxu0 %v99
    %130 = vmatprep.subr.mxu0 0.0
    %131 = vmatpush1.msra.mxu0 %v100
    %132 = vmatprep.subr.mxu0 0.0
    %133 = vmatpush1.msra.mxu0 %v101
    %134 = vmatprep.subr.mxu0 0.0
    %135 = vmatpush1.msra.mxu0 %v102
    %136 = vmatprep.subr.mxu0 0.0
    %137 = vmatpush1.msra.mxu0 %v103
    %138 = vmatprep.subr.mxu0 0.0
    %139 = vmatpush1.msra.mxu0 %v104
    %140 = vmatprep.subr.mxu0 0.0
    %141 = vmatpush1.msra.mxu0 %v105
    %142 = vmatprep.subr.mxu0 0.0
    %143 = vmatpush1.msra.mxu0 %v106
    %144 = vmatprep.subr.mxu0 0.0
    %145 = vmatpush1.msra.mxu0 %v107
    %146 = vmatprep.subr.mxu0 0.0
    %147 = vmatpush1.msra.mxu0 %v108
    %148 = vmatprep.subr.mxu0 0.0
    %149 = vmatpush1.msra.mxu0 0.0
    %150 = vmatprep.subr.mxu0 0.0
    %151 = vmatpush1.msra.mxu0 0.0
    %152 = vmatprep.subr.mxu0 0.0
    %153 = vmatpush1.msra.mxu0 0.0
    %154 = vmatprep.subr.mxu0 0.0
    %155 = vmatpush1.msra.mxu0 0.0
    %156 = vmatprep.subr.mxu0 0.0
    %157 = vmatpush1.msra.mxu0 0.0
    %158 = vmatprep.subr.mxu0 0.0
    %159 = vmatpush1.msra.mxu0 0.0
    %160 = vmatprep.subr.mxu0 0.0
    %161 = vmatpush1.msra.mxu0 0.0
    %162 = vmatprep.subr.mxu0 0.0
    %163 = vmatpush1.msra.mxu0 0.0
    %164 = vmatprep.subr.mxu0 0.0
    %165 = vmatpush1.msra.mxu0 0.0
    %166 = vmatprep.subr.mxu0 0.0
    %167 = vmatpush1.msra.mxu0 0.0
    %168 = vmatprep.subr.mxu0 0.0
    %169 = vmatpush1.msra.mxu0 0.0
    %170 = vmatprep.subr.mxu0 0.0
    %171 = vmatpush1.msra.mxu0 0.0
    %172 = vmatprep.subr.mxu0 0.0
    %173 = vmatpush1.msra.mxu0 0.0
    %174 = vmatprep.subr.mxu0 0.0
    %175 = vmatpush1.msra.mxu0 0.0
    %176 = vmatprep.subr.mxu0 0.0
    %177 = vmatpush1.msra.mxu0 0.0
    %178 = vmatprep.subr.mxu0 0.0
    %179 = vmatpush1.msra.mxu0 0.0
    %180 = vmatprep.mubr.f32.mxu0 0.0
    %181 = vmatmul.mubr.f32.gmra.mrb[0].mxu0 %v85
    %v182 = vpop.f32.mrb[0].mxu0
    %v183 = vadd.f32 %v114, %v182
    %v184 = vpop.f32.mrb[0].mxu0
    %185 = vmatprep.mubr.f32.mxu0 0.0
    %186 = vmatmul.mubr.f32.gmra.mrb[0].mxu0 %v86
    %v187 = vpop.f32.mrb[0].mxu0
    %v188 = vadd.f32 %v114, %v187
    %v189 = vpop.f32.mrb[0].mxu0
    %190 = vmatprep.mubr.f32.mxu0 0.0
    %191 = vmatmul.mubr.f32.gmra.mrb[0].mxu0 %v87
    %v192 = vpop.f32.mrb[0].mxu0
    %v193 = vadd.f32 %v114, %v192
    %v194 = vpop.f32.mrb[0].mxu0
    %195 = vmatprep.mubr.f32.mxu0 0.0
    %196 = vmatmul.mubr.f32.gmra.mrb[0].mxu0 %v88
    %v197 = vpop.f32.mrb[0].mxu0
    %v198 = vadd.f32 %v114, %v197
    %v199 = vpop.f32.mrb[0].mxu0
    %200 = vmatprep.mubr.f32.mxu0 0.0
    %201 = vmatmul.mubr.f32.gmra.mrb[0].mxu0 %v89
    %v202 = vpop.f32.mrb[0].mxu0
    %v203 = vadd.f32 %v114, %v202
    %v204 = vpop.f32.mrb[0].mxu0
    %205 = vmatprep.mubr.f32.mxu0 0.0
    %206 = vmatmul.mubr.f32.gmra.mrb[0].mxu0 %v90
    %v207 = vpop.f32.mrb[0].mxu0
    %v208 = vadd.f32 %v114, %v207
    %v209 = vpop.f32.mrb[0].mxu0
    %210 = vmatprep.mubr.f32.mxu0 0.0
    %211 = vmatmul.mubr.f32.gmra.mrb[0].mxu0 %v91
    %v212 = vpop.f32.mrb[0].mxu0
    %v213 = vadd.f32 %v114, %v212
    %v214 = vpop.f32.mrb[0].mxu0
    %215 = vmatprep.mubr.f32.mxu0 0.0
    %216 = vmatmul.mubr.f32.gmra.mrb[0].mxu0 %v92
    %v217 = vpop.f32.mrb[0].mxu0
    %v218 = vadd.f32 %v114, %v217
    %v219 = vpop.f32.mrb[0].mxu0
    %220 = vdwg.mxu0
    %v221 = vmax.f32 %v183, 0.0
    %v222 = vmax.f32 %v188, 0.0
    %v223 = vmax.f32 %v193, 0.0
    %v224 = vmax.f32 %v198, 0.0
    %v225 = vmax.f32 %v203, 0.0
    %v226 = vmax.f32 %v208, 0.0
    %v227 = vmax.f32 %v213, 0.0
    %v228 = vmax.f32 %v218, 0.0
    %v229 = vld [vmem:[#allocation7] sm:$0xff]
    %v230 = vld [vmem:[#allocation7 + $0x8] sm:$0xff]
    %v231 = vld [vmem:[#allocation7 + $0x10] sm:$0xff]
    %v232 = vld [vmem:[#allocation7 + $0x18] sm:$0xff]
    %v233 = vld [vmem:[#allocation7 + $0x20] sm:$0xff]
    %v234 = vld [vmem:[#allocation7 + $0x28] sm:$0xff]
    %v235 = vld [vmem:[#allocation7 + $0x30] sm:$0xff]
    %v236 = vld [vmem:[#allocation7 + $0x38] sm:$0xff]
    %v237 = vld [vmem:[#allocation7 + $0x40] sm:$0xff]
    %v238 = vld [vmem:[#allocation7 + $0x48] sm:$0xff]
    %v239 = vld [vmem:[#allocation7 + $0x50] sm:$0xff]
    %v240 = vld [vmem:[#allocation7 + $0x58] sm:$0xff]
    %v241 = vld [vmem:[#allocation7 + $0x60] sm:$0xff]
    %v242 = vld [vmem:[#allocation7 + $0x68] sm:$0xff]
    %v243 = vld [vmem:[#allocation7 + $0x70] sm:$0xff]
    %v244 = vld [vmem:[#allocation7 + $0x78] sm:$0xff]
    %v245 = vld [vmem:[%s4] sm:$0x1]
    %v247 = vlaneseq
    %v248 = vshrl.u32 %v247, 7
    %v249 = vsub.s32 0, %v248
    %v250 = vrot.slane %v245, %v249
    %252 = vmatprep.subr.mxu0 0.0
    %253 = vmatpush1.msra.mxu0 %v229
    %254 = vmatprep.subr.mxu0 0.0
    %255 = vmatpush1.msra.mxu0 %v230
    %256 = vmatprep.subr.mxu0 0.0
    %257 = vmatpush1.msra.mxu0 %v231
    %258 = vmatprep.subr.mxu0 0.0
    %259 = vmatpush1.msra.mxu0 %v232
    %260 = vmatprep.subr.mxu0 0.0
    %261 = vmatpush1.msra.mxu0 %v233
    %262 = vmatprep.subr.mxu0 0.0
    %263 = vmatpush1.msra.mxu0 %v234
    %264 = vmatprep.subr.mxu0 0.0
    %265 = vmatpush1.msra.mxu0 %v235
    %266 = vmatprep.subr.mxu0 0.0
    %267 = vmatpush1.msra.mxu0 %v236
    %268 = vmatprep.subr.mxu0 0.0
    %269 = vmatpush1.msra.mxu0 %v237
    %270 = vmatprep.subr.mxu0 0.0
    %271 = vmatpush1.msra.mxu0 %v238
    %272 = vmatprep.subr.mxu0 0.0
    %273 = vmatpush1.msra.mxu0 %v239
    %274 = vmatprep.subr.mxu0 0.0
    %275 = vmatpush1.msra.mxu0 %v240
    %276 = vmatprep.subr.mxu0 0.0
    %277 = vmatpush1.msra.mxu0 %v241
    %278 = vmatprep.subr.mxu0 0.0
    %279 = vmatpush1.msra.mxu0 %v242
    %280 = vmatprep.subr.mxu0 0.0
    %281 = vmatpush1.msra.mxu0 %v243
    %282 = vmatprep.subr.mxu0 0.0
    %283 = vmatpush1.msra.mxu0 %v244
    %284 = vmatprep.subr.mxu0 0.0
    %285 = vmatpush1.msra.mxu0 0.0
    %286 = vmatprep.subr.mxu0 0.0
    %287 = vmatpush1.msra.mxu0 0.0
    %288 = vmatprep.subr.mxu0 0.0
    %289 = vmatpush1.msra.mxu0 0.0
    %290 = vmatprep.subr.mxu0 0.0
    %291 = vmatpush1.msra.mxu0 0.0
    %292 = vmatprep.subr.mxu0 0.0
    %293 = vmatpush1.msra.mxu0 0.0
    %294 = vmatprep.subr.mxu0 0.0
    %295 = vmatpush1.msra.mxu0 0.0
    %296 = vmatprep.subr.mxu0 0.0
    %297 = vmatpush1.msra.mxu0 0.0
    %298 = vmatprep.subr.mxu0 0.0
    %299 = vmatpush1.msra.mxu0 0.0
    %300 = vmatprep.subr.mxu0 0.0
    %301 = vmatpush1.msra.mxu0 0.0
    %302 = vmatprep.subr.mxu0 0.0
    %303 = vmatpush1.msra.mxu0 0.0
    %304 = vmatprep.subr.mxu0 0.0
    %305 = vmatpush1.msra.mxu0 0.0
    %306 = vmatprep.subr.mxu0 0.0
    %307 = vmatpush1.msra.mxu0 0.0
    %308 = vmatprep.subr.mxu0 0.0
    %309 = vmatpush1.msra.mxu0 0.0
    %310 = vmatprep.subr.mxu0 0.0
    %311 = vmatpush1.msra.mxu0 0.0
    %312 = vmatprep.subr.mxu0 0.0
    %313 = vmatpush1.msra.mxu0 0.0
    %314 = vmatprep.subr.mxu0 0.0
    %315 = vmatpush1.msra.mxu0 0.0
    %316 = vmatprep.mubr.f32.mxu0 0.0
    %317 = vmatmul.mubr.f32.gmra.mrb[0].mxu0 %v221
    %v318 = vpop.f32.mrb[0].mxu0
    %v319 = vadd.f32 %v250, %v318
    %v320 = vpop.f32.mrb[0].mxu0
    %321 = vmatprep.mubr.f32.mxu0 0.0
    %322 = vmatmul.mubr.f32.gmra.mrb[0].mxu0 %v222
    %v323 = vpop.f32.mrb[0].mxu0
    %v324 = vadd.f32 %v250, %v323
    %v325 = vpop.f32.mrb[0].mxu0
    %326 = vmatprep.mubr.f32.mxu0 0.0
    %327 = vmatmul.mubr.f32.gmra.mrb[0].mxu0 %v223
    %v328 = vpop.f32.mrb[0].mxu0
    %v329 = vadd.f32 %v250, %v328
    %v330 = vpop.f32.mrb[0].mxu0
    %331 = vmatprep.mubr.f32.mxu0 0.0
    %332 = vmatmul.mubr.f32.gmra.mrb[0].mxu0 %v224
    %v333 = vpop.f32.mrb[0].mxu0
    %v334 = vadd.f32 %v250, %v333
    %v335 = vpop.f32.mrb[0].mxu0
    %336 = vmatprep.mubr.f32.mxu0 0.0
    %337 = vmatmul.mubr.f32.gmra.mrb[0].mxu0 %v225
    %v338 = vpop.f32.mrb[0].mxu0
    %v339 = vadd.f32 %v250, %v338
    %v340 = vpop.f32.mrb[0].mxu0
    %341 = vmatprep.mubr.f32.mxu0 0.0
    %342 = vmatmul.mubr.f32.gmra.mrb[0].mxu0 %v226
    %v343 = vpop.f32.mrb[0].mxu0
    %v344 = vadd.f32 %v250, %v343
    %v345 = vpop.f32.mrb[0].mxu0
    %346 = vmatprep.mubr.f32.mxu0 0.0
    %347 = vmatmul.mubr.f32.gmra.mrb[0].mxu0 %v227
    %v348 = vpop.f32.mrb[0].mxu0
    %v349 = vadd.f32 %v250, %v348
    %v350 = vpop.f32.mrb[0].mxu0
    %351 = vmatprep.mubr.f32.mxu0 0.0
    %352 = vmatmul.mubr.f32.gmra.mrb[0].mxu0 %v228
    %v353 = vpop.f32.mrb[0].mxu0
    %v354 = vadd.f32 %v250, %v353
    %v355 = vpop.f32.mrb[0].mxu0
    %356 = vdwg.mxu0
    %357 = vst [vmem:[#allocation10] sm:$0xff] %v319
    %358 = vst [vmem:[#allocation10 + $0x8] sm:$0xff] %v324
    %359 = vst [vmem:[#allocation10 + $0x10] sm:$0xff] %v329
    %360 = vst [vmem:[#allocation10 + $0x18] sm:$0xff] %v334
    %361 = vst [vmem:[#allocation10 + $0x20] sm:$0xff] %v339
    %362 = vst [vmem:[#allocation10 + $0x28] sm:$0xff] %v344
    %363 = vst [vmem:[#allocation10 + $0x30] sm:$0xff] %v349
    %364 = vst [vmem:[#allocation10 + $0x38] sm:$0xff] %v354
    %v365 = vrot.slane %v319, 4
    %v366 = vadd.f32 %v319, %v365
    %v367 = vrot.slane %v366, 2
    %v368 = vadd.f32 %v366, %v367
    %v369 = vrot.slane %v368, 1
    %v370 = vadd.f32 %v368, %v369
    %v371 = vrot.slane %v324, 4
    %v372 = vadd.f32 %v324, %v371
    %v373 = vrot.slane %v372, 2
    %v374 = vadd.f32 %v372, %v373
    %v375 = vrot.slane %v374, 1
    %v376 = vadd.f32 %v374, %v375
    %v377 = vrot.slane %v329, 4
    %v378 = vadd.f32 %v329, %v377
    %v379 = vrot.slane %v378, 2
    %v380 = vadd.f32 %v378, %v379
    %v381 = vrot.slane %v380, 1
    %v382 = vadd.f32 %v380, %v381
    %v383 = vrot.slane %v334, 4
    %v384 = vadd.f32 %v334, %v383
    %v385 = vrot.slane %v384, 2
    %v386 = vadd.f32 %v384, %v385
    %v387 = vrot.slane %v386, 1
    %v388 = vadd.f32 %v386, %v387
    %v389 = vrot.slane %v339, 4
    %v390 = vadd.f32 %v339, %v389
    %v391 = vrot.slane %v390, 2
    %v392 = vadd.f32 %v390, %v391
    %v393 = vrot.slane %v392, 1
    %v394 = vadd.f32 %v392, %v393
    %v395 = vrot.slane %v344, 4
    %v396 = vadd.f32 %v344, %v395
    %v397 = vrot.slane %v396, 2
    %v398 = vadd.f32 %v396, %v397
    %v399 = vrot.slane %v398, 1
    %v400 = vadd.f32 %v398, %v399
    %v401 = vrot.slane %v349, 4
    %v402 = vadd.f32 %v349, %v401
    %v403 = vrot.slane %v402, 2
    %v404 = vadd.f32 %v402, %v403
    %v405 = vrot.slane %v404, 1
    %v406 = vadd.f32 %v404, %v405
    %v407 = vrot.slane %v354, 4
    %v408 = vadd.f32 %v354, %v407
    %v409 = vrot.slane %v408, 2
    %v410 = vadd.f32 %v408, %v409
    %v411 = vrot.slane %v410, 1
    %v412 = vadd.f32 %v410, %v411
    %v413 = vrcp.pop 8.0
    %v414 = vmul.f32 %v370, %v413
    %v415 = vmul.f32 %v376, %v413
    %v416 = vmul.f32 %v382, %v413
    %v417 = vmul.f32 %v388, %v413
    %v418 = vmul.f32 %v394, %v413
    %v419 = vmul.f32 %v400, %v413
    %v420 = vmul.f32 %v406, %v413
    %v421 = vmul.f32 %v412, %v413
    %v422 = vld [vmem:[#allocation8] sm:$0xff]
    %v423 = vld [vmem:[#allocation8 + $0x8] sm:$0xff]
    %v424 = vld [vmem:[#allocation8 + $0x10] sm:$0xff]
    %v425 = vld [vmem:[#allocation8 + $0x18] sm:$0xff]
    %v426 = vld [vmem:[#allocation8 + $0x20] sm:$0xff]
    %v427 = vld [vmem:[#allocation8 + $0x28] sm:$0xff]
    %v428 = vld [vmem:[#allocation8 + $0x30] sm:$0xff]
    %v429 = vld [vmem:[#allocation8 + $0x38] sm:$0xff]
    %v430 = vld [vmem:[#allocation8 + $0x40] sm:$0xff]
    %v431 = vld [vmem:[#allocation8 + $0x48] sm:$0xff]
    %v432 = vld [vmem:[#allocation8 + $0x50] sm:$0xff]
    %v433 = vld [vmem:[#allocation8 + $0x58] sm:$0xff]
    %v434 = vld [vmem:[#allocation8 + $0x60] sm:$0xff]
    %v435 = vld [vmem:[#allocation8 + $0x68] sm:$0xff]
    %v436 = vld [vmem:[#allocation8 + $0x70] sm:$0xff]
    %v437 = vld [vmem:[#allocation8 + $0x78] sm:$0xff]
    %v438 = vld [vmem:[#allocation8 + $0x80] sm:$0xff]
    %v439 = vld [vmem:[#allocation8 + $0x88] sm:$0xff]
    %v440 = vld [vmem:[#allocation8 + $0x90] sm:$0xff]
    %v441 = vld [vmem:[#allocation8 + $0x98] sm:$0xff]
    %v442 = vld [vmem:[#allocation8 + $0xa0] sm:$0xff]
    %v443 = vld [vmem:[#allocation8 + $0xa8] sm:$0xff]
    %v444 = vld [vmem:[#allocation8 + $0xb0] sm:$0xff]
    %v445 = vld [vmem:[#allocation8 + $0xb8] sm:$0xff]
    %v446 = vld [vmem:[#allocation8 + $0xc0] sm:$0xff]
    %v447 = vld [vmem:[#allocation8 + $0xc8] sm:$0xff]
    %v448 = vld [vmem:[#allocation8 + $0xd0] sm:$0xff]
    %v449 = vld [vmem:[#allocation8 + $0xd8] sm:$0xff]
    %v450 = vld [vmem:[#allocation8 + $0xe0] sm:$0xff]
    %v451 = vld [vmem:[#allocation8 + $0xe8] sm:$0xff]
    %v452 = vld [vmem:[#allocation8 + $0xf0] sm:$0xff]
    %v453 = vld [vmem:[#allocation8 + $0xf8] sm:$0xff]
    %v454 = vld [vmem:[#allocation8 + $0x100] sm:$0xff]
    %v455 = vld [vmem:[#allocation8 + $0x108] sm:$0xff]
    %v456 = vld [vmem:[#allocation8 + $0x110] sm:$0xff]
    %v457 = vld [vmem:[#allocation8 + $0x118] sm:$0xff]
    %v458 = vld [vmem:[#allocation8 + $0x120] sm:$0xff]
    %v459 = vld [vmem:[#allocation8 + $0x128] sm:$0xff]
    %v460 = vld [vmem:[#allocation8 + $0x130] sm:$0xff]
    %v461 = vld [vmem:[#allocation8 + $0x138] sm:$0xff]
    %v462 = vld [vmem:[#allocation8 + $0x140] sm:$0xff]
    %v463 = vld [vmem:[#allocation8 + $0x148] sm:$0xff]
    %v464 = vld [vmem:[#allocation8 + $0x150] sm:$0xff]
    %v465 = vld [vmem:[#allocation8 + $0x158] sm:$0xff]
    %v466 = vld [vmem:[#allocation8 + $0x160] sm:$0xff]
    %v467 = vld [vmem:[#allocation8 + $0x168] sm:$0xff]
    %v468 = vld [vmem:[#allocation8 + $0x170] sm:$0xff]
    %v469 = vld [vmem:[#allocation8 + $0x178] sm:$0xff]
    %v470 = vld [vmem:[#allocation8 + $0x180] sm:$0xff]
    %v471 = vld [vmem:[#allocation8 + $0x188] sm:$0xff]
    %v472 = vld [vmem:[#allocation8 + $0x190] sm:$0xff]
    %v473 = vld [vmem:[#allocation8 + $0x198] sm:$0xff]
    %v474 = vld [vmem:[#allocation8 + $0x1a0] sm:$0xff]
    %v475 = vld [vmem:[#allocation8 + $0x1a8] sm:$0xff]
    %v476 = vld [vmem:[#allocation8 + $0x1b0] sm:$0xff]
    %v477 = vld [vmem:[#allocation8 + $0x1b8] sm:$0xff]
    %v478 = vld [vmem:[#allocation8 + $0x1c0] sm:$0xff]
    %v479 = vld [vmem:[#allocation8 + $0x1c8] sm:$0xff]
    %v480 = vld [vmem:[#allocation8 + $0x1d0] sm:$0xff]
    %v481 = vld [vmem:[#allocation8 + $0x1d8] sm:$0xff]
    %v482 = vld [vmem:[#allocation8 + $0x1e0] sm:$0xff]
    %v483 = vld [vmem:[#allocation8 + $0x1e8] sm:$0xff]
    %v484 = vld [vmem:[#allocation8 + $0x1f0] sm:$0xff]
    %v485 = vld [vmem:[#allocation8 + $0x1f8] sm:$0xff]
    %v486 = vld [vmem:[#allocation8 + $0x200] sm:$0xff]
    %v487 = vld [vmem:[#allocation8 + $0x208] sm:$0xff]
    %v488 = vld [vmem:[#allocation8 + $0x210] sm:$0xff]
    %v489 = vld [vmem:[#allocation8 + $0x218] sm:$0xff]
    %v490 = vld [vmem:[#allocation8 + $0x220] sm:$0xff]
    %v491 = vld [vmem:[#allocation8 + $0x228] sm:$0xff]
    %v492 = vld [vmem:[#allocation8 + $0x230] sm:$0xff]
    %v493 = vld [vmem:[#allocation8 + $0x238] sm:$0xff]
    %v494 = vld [vmem:[#allocation8 + $0x240] sm:$0xff]
    %v495 = vld [vmem:[#allocation8 + $0x248] sm:$0xff]
    %v496 = vld [vmem:[#allocation8 + $0x250] sm:$0xff]
    %v497 = vld [vmem:[#allocation8 + $0x258] sm:$0xff]
    %v498 = vld [vmem:[#allocation8 + $0x260] sm:$0xff]
    %v499 = vld [vmem:[#allocation8 + $0x268] sm:$0xff]
    %v500 = vld [vmem:[#allocation8 + $0x270] sm:$0xff]
    %v501 = vld [vmem:[#allocation8 + $0x278] sm:$0xff]
    %v502 = vld [vmem:[%s6] sm:$0x1f]
    %v504 = vlaneseq
    %v505 = vshrl.u32 %v504, 7
    %v506 = vsub.s32 0, %v505
    %v507 = vrot.slane %v502, %v506
    %v508 = vlaneseq
    %v509 = vshrl.u32 %v508, 7
    %v510 = vsub.s32 1, %v509
    %v511 = vrot.slane %v502, %v510
    %v512 = vlaneseq
    %v513 = vshrl.u32 %v512, 7
    %v514 = vsub.s32 2, %v513
    %v515 = vrot.slane %v502, %v514
    %v516 = vlaneseq
    %v517 = vshrl.u32 %v516, 7
    %v518 = vsub.s32 3, %v517
    %v519 = vrot.slane %v502, %v518
    %v520 = vlaneseq
    %v521 = vshrl.u32 %v520, 7
    %v522 = vsub.s32 4, %v521
    %v523 = vrot.slane %v502, %v522
    %vm537 = vcmask 1041409
    %v538 = vsel %vm537, %v415, %v414
    %vm539 = vcmask 1042434
    %v540 = vsel %vm539, %v416, %v538
    %vm541 = vcmask 1043459
    %v542 = vsel %vm541, %v417, %v540
    %vm543 = vcmask 1044484
    %v544 = vsel %vm543, %v418, %v542
    %vm545 = vcmask 1045509
    %v546 = vsel %vm545, %v419, %v544
    %vm547 = vcmask 1046534
    %v548 = vsel %vm547, %v420, %v546
    %vm549 = vcmask 1047559
    %v550 = vsel %vm549, %v421, %v548
    %552 = vmatprep.subr.mxu0 %v423
    %553 = vmatpush1.msra.mxu0 %v422
    %554 = vmatprep.subr.mxu0 %v428
    %555 = vmatpush1.msra.mxu0 %v427
    %556 = vmatprep.subr.mxu0 %v433
    %557 = vmatpush1.msra.mxu0 %v432
    %558 = vmatprep.subr.mxu0 %v438
    %559 = vmatpush1.msra.mxu0 %v437
    %560 = vmatprep.subr.mxu0 %v443
    %561 = vmatpush1.msra.mxu0 %v442
    %562 = vmatprep.subr.mxu0 %v448
    %563 = vmatpush1.msra.mxu0 %v447
    %564 = vmatprep.subr.mxu0 %v453
    %565 = vmatpush1.msra.mxu0 %v452
    %566 = vmatprep.subr.mxu0 %v458
    %567 = vmatpush1.msra.mxu0 %v457
    %568 = vmatprep.subr.mxu0 %v463
    %569 = vmatpush1.msra.mxu0 %v462
    %570 = vmatprep.subr.mxu0 %v468
    %571 = vmatpush1.msra.mxu0 %v467
    %572 = vmatprep.subr.mxu0 %v473
    %573 = vmatpush1.msra.mxu0 %v472
    %574 = vmatprep.subr.mxu0 %v478
    %575 = vmatpush1.msra.mxu0 %v477
    %576 = vmatprep.subr.mxu0 %v483
    %577 = vmatpush1.msra.mxu0 %v482
    %578 = vmatprep.subr.mxu0 %v488
    %579 = vmatpush1.msra.mxu0 %v487
    %580 = vmatprep.subr.mxu0 %v493
    %581 = vmatpush1.msra.mxu0 %v492
    %582 = vmatprep.subr.mxu0 %v498
    %583 = vmatpush1.msra.mxu0 %v497
    %584 = vmatprep.subr.mxu0 0.0
    %585 = vmatpush1.msra.mxu0 0.0
    %586 = vmatprep.subr.mxu0 0.0
    %587 = vmatpush1.msra.mxu0 0.0
    %588 = vmatprep.subr.mxu0 0.0
    %589 = vmatpush1.msra.mxu0 0.0
    %590 = vmatprep.subr.mxu0 0.0
    %591 = vmatpush1.msra.mxu0 0.0
    %592 = vmatprep.subr.mxu0 0.0
    %593 = vmatpush1.msra.mxu0 0.0
    %594 = vmatprep.subr.mxu0 0.0
    %595 = vmatpush1.msra.mxu0 0.0
    %596 = vmatprep.subr.mxu0 0.0
    %597 = vmatpush1.msra.mxu0 0.0
    %598 = vmatprep.subr.mxu0 0.0
    %599 = vmatpush1.msra.mxu0 0.0
    %600 = vmatprep.subr.mxu0 0.0
    %601 = vmatpush1.msra.mxu0 0.0
    %602 = vmatprep.subr.mxu0 0.0
    %603 = vmatpush1.msra.mxu0 0.0
    %604 = vmatprep.subr.mxu0 0.0
    %605 = vmatpush1.msra.mxu0 0.0
    %606 = vmatprep.subr.mxu0 0.0
    %607 = vmatpush1.msra.mxu0 0.0
    %608 = vmatprep.subr.mxu0 0.0
    %609 = vmatpush1.msra.mxu0 0.0
    %610 = vmatprep.subr.mxu0 0.0
    %611 = vmatpush1.msra.mxu0 0.0
    %612 = vmatprep.subr.mxu0 0.0
    %613 = vmatpush1.msra.mxu0 0.0
    %614 = vmatprep.subr.mxu0 0.0
    %615 = vmatpush1.msra.mxu0 0.0
    %616 = vmatprep.mubr.f32.mxu0 0.0
    %617 = vmatmul.mubr.f32.gmra.mrb[0].mxu0 %v550
    %v618 = vpop.f32.mrb[0].mxu0
    %v619 = vadd.f32 %v507, %v618
    %v620 = vpop.f32.mrb[0].mxu0
    %v621 = vadd.f32 %v511, %v620
    %622 = vdwg.mxu0
    %623 = vmatprep.subr.mxu0 %v425
    %624 = vmatpush1.msra.mxu0 %v424
    %625 = vmatprep.subr.mxu0 %v430
    %626 = vmatpush1.msra.mxu0 %v429
    %627 = vmatprep.subr.mxu0 %v435
    %628 = vmatpush1.msra.mxu0 %v434
    %629 = vmatprep.subr.mxu0 %v440
    %630 = vmatpush1.msra.mxu0 %v439
    %631 = vmatprep.subr.mxu0 %v445
    %632 = vmatpush1.msra.mxu0 %v444
    %633 = vmatprep.subr.mxu0 %v450
    %634 = vmatpush1.msra.mxu0 %v449
    %635 = vmatprep.subr.mxu0 %v455
    %636 = vmatpush1.msra.mxu0 %v454
    %637 = vmatprep.subr.mxu0 %v460
    %638 = vmatpush1.msra.mxu0 %v459
    %639 = vmatprep.subr.mxu0 %v465
    %640 = vmatpush1.msra.mxu0 %v464
    %641 = vmatprep.subr.mxu0 %v470
    %642 = vmatpush1.msra.mxu0 %v469
    %643 = vmatprep.subr.mxu0 %v475
    %644 = vmatpush1.msra.mxu0 %v474
    %645 = vmatprep.subr.mxu0 %v480
    %646 = vmatpush1.msra.mxu0 %v479
    %647 = vmatprep.subr.mxu0 %v485
    %648 = vmatpush1.msra.mxu0 %v484
    %649 = vmatprep.subr.mxu0 %v490
    %650 = vmatpush1.msra.mxu0 %v489
    %651 = vmatprep.subr.mxu0 %v495
    %652 = vmatpush1.msra.mxu0 %v494
    %653 = vmatprep.subr.mxu0 %v500
    %654 = vmatpush1.msra.mxu0 %v499
    %655 = vmatprep.subr.mxu0 0.0
    %656 = vmatpush1.msra.mxu0 0.0
    %657 = vmatprep.subr.mxu0 0.0
    %658 = vmatpush1.msra.mxu0 0.0
    %659 = vmatprep.subr.mxu0 0.0
    %660 = vmatpush1.msra.mxu0 0.0
    %661 = vmatprep.subr.mxu0 0.0
    %662 = vmatpush1.msra.mxu0 0.0
    %663 = vmatprep.subr.mxu0 0.0
    %664 = vmatpush1.msra.mxu0 0.0
    %665 = vmatprep.subr.mxu0 0.0
    %666 = vmatpush1.msra.mxu0 0.0
    %667 = vmatprep.subr.mxu0 0.0
    %668 = vmatpush1.msra.mxu0 0.0
    %669 = vmatprep.subr.mxu0 0.0
    %670 = vmatpush1.msra.mxu0 0.0
    %671 = vmatprep.subr.mxu0 0.0
    %672 = vmatpush1.msra.mxu0 0.0
    %673 = vmatprep.subr.mxu0 0.0
    %674 = vmatpush1.msra.mxu0 0.0
    %675 = vmatprep.subr.mxu0 0.0
    %676 = vmatpush1.msra.mxu0 0.0
    %677 = vmatprep.subr.mxu0 0.0
    %678 = vmatpush1.msra.mxu0 0.0
    %679 = vmatprep.subr.mxu0 0.0
    %680 = vmatpush1.msra.mxu0 0.0
    %681 = vmatprep.subr.mxu0 0.0
    %682 = vmatpush1.msra.mxu0 0.0
    %683 = vmatprep.subr.mxu0 0.0
    %684 = vmatpush1.msra.mxu0 0.0
    %685 = vmatprep.subr.mxu0 0.0
    %686 = vmatpush1.msra.mxu0 0.0
    %687 = vmatprep.mubr.f32.mxu0 0.0
    %688 = vmatmul.mubr.f32.gmra.mrb[0].mxu0 %v550
    %v689 = vpop.f32.mrb[0].mxu0
    %v690 = vadd.f32 %v515, %v689
    %v691 = vpop.f32.mrb[0].mxu0
    %v692 = vadd.f32 %v519, %v691
    %693 = vdwg.mxu0
    %694 = vmatprep.subr.mxu0 0.0
    %695 = vmatpush1.msra.mxu0 %v426
    %696 = vmatprep.subr.mxu0 0.0
    %697 = vmatpush1.msra.mxu0 %v431
    %698 = vmatprep.subr.mxu0 0.0
    %699 = vmatpush1.msra.mxu0 %v436
    %700 = vmatprep.subr.mxu0 0.0
    %701 = vmatpush1.msra.mxu0 %v441
    %702 = vmatprep.subr.mxu0 0.0
    %703 = vmatpush1.msra.mxu0 %v446
    %704 = vmatprep.subr.mxu0 0.0
    %705 = vmatpush1.msra.mxu0 %v451
    %706 = vmatprep.subr.mxu0 0.0
    %707 = vmatpush1.msra.mxu0 %v456
    %708 = vmatprep.subr.mxu0 0.0
    %709 = vmatpush1.msra.mxu0 %v461
    %710 = vmatprep.subr.mxu0 0.0
    %711 = vmatpush1.msra.mxu0 %v466
    %712 = vmatprep.subr.mxu0 0.0
    %713 = vmatpush1.msra.mxu0 %v471
    %714 = vmatprep.subr.mxu0 0.0
    %715 = vmatpush1.msra.mxu0 %v476
    %716 = vmatprep.subr.mxu0 0.0
    %717 = vmatpush1.msra.mxu0 %v481
    %718 = vmatprep.subr.mxu0 0.0
    %719 = vmatpush1.msra.mxu0 %v486
    %720 = vmatprep.subr.mxu0 0.0
    %721 = vmatpush1.msra.mxu0 %v491
    %722 = vmatprep.subr.mxu0 0.0
    %723 = vmatpush1.msra.mxu0 %v496
    %724 = vmatprep.subr.mxu0 0.0
    %725 = vmatpush1.msra.mxu0 %v501
    %726 = vmatprep.subr.mxu0 0.0
    %727 = vmatpush1.msra.mxu0 0.0
    %728 = vmatprep.subr.mxu0 0.0
    %729 = vmatpush1.msra.mxu0 0.0
    %730 = vmatprep.subr.mxu0 0.0
    %731 = vmatpush1.msra.mxu0 0.0
    %732 = vmatprep.subr.mxu0 0.0
    %733 = vmatpush1.msra.mxu0 0.0
    %734 = vmatprep.subr.mxu0 0.0
    %735 = vmatpush1.msra.mxu0 0.0
    %736 = vmatprep.subr.mxu0 0.0
    %737 = vmatpush1.msra.mxu0 0.0
    %738 = vmatprep.subr.mxu0 0.0
    %739 = vmatpush1.msra.mxu0 0.0
    %740 = vmatprep.subr.mxu0 0.0
    %741 = vmatpush1.msra.mxu0 0.0
    %742 = vmatprep.subr.mxu0 0.0
    %743 = vmatpush1.msra.mxu0 0.0
    %744 = vmatprep.subr.mxu0 0.0
    %745 = vmatpush1.msra.mxu0 0.0
    %746 = vmatprep.subr.mxu0 0.0
    %747 = vmatpush1.msra.mxu0 0.0
    %748 = vmatprep.subr.mxu0 0.0
    %749 = vmatpush1.msra.mxu0 0.0
    %750 = vmatprep.subr.mxu0 0.0
    %751 = vmatpush1.msra.mxu0 0.0
    %752 = vmatprep.subr.mxu0 0.0
    %753 = vmatpush1.msra.mxu0 0.0
    %754 = vmatprep.subr.mxu0 0.0
    %755 = vmatpush1.msra.mxu0 0.0
    %756 = vmatprep.subr.mxu0 0.0
    %757 = vmatpush1.msra.mxu0 0.0
    %758 = vmatprep.mubr.f32.mxu0 0.0
    %759 = vmatmul.mubr.f32.gmra.mrb[0].mxu0 %v550
    %v760 = vpop.f32.mrb[0].mxu0
    %v761 = vadd.f32 %v523, %v760
    %v762 = vpop.f32.mrb[0].mxu0
    %763 = vdwg.mxu0
    %764 = vst [vmem:[#allocation11] sm:$0xff] %v619
    %765 = vst [vmem:[#allocation11 + $0x8] sm:$0xff] %v621
    %766 = vst [vmem:[#allocation11 + $0x10] sm:$0xff] %v690
    %767 = vst [vmem:[#allocation11 + $0x18] sm:$0xff] %v692
    %768 = vst [vmem:[#allocation11 + $0x20] sm:$0xff] %v761
    // Predicated region
    $region46: #{tpu_custom_call.1} parent=1 // pred_check
      _
    $region47: #{tpu_custom_call.1} parent=1 // pred_check_branch
      %770 = sbr.rel (0) target = $region49
    $region48: #{tpu_custom_call.1} parent=1 // pred_region
      %s772 = ssub.s32 1024, 1024
      %773 = vsyncadd [#allocation4], %s772
      %s774 = sshll.u32 [#allocation10], 4
      %s775 = int_to_ptr.vmem [resolvable:$true] %s774
      %780 = dma.vmem_to_hbm [thread:$0]  %s775, 1024, %s7, [#allocation4], 128, 128, 8
    $region49: #{tpu_custom_call.1} parent=1 // pred_fallthru
      _
    // Predicated region
    $region50: #{tpu_custom_call.1} parent=1 // pred_check
      _
    $region51: #{tpu_custom_call.1} parent=1 // pred_check_branch
      %782 = sbr.rel (0) target = $region53
    $region52: #{tpu_custom_call.1} parent=1 // pred_region
      %s784 = ssub.s32 640, 640
      %785 = vsyncadd [#allocation12], %s784
      %s787 = sshll.u32 [#allocation11], 4
      %s788 = int_to_ptr.vmem [resolvable:$true] %s787
      %790 = dma.vmem_to_hbm [thread:$0]  %s788, 640, %s8, [#allocation12]
    $region53: #{tpu_custom_call.1} parent=1 // pred_fallthru
      _
    // Predicated region
    $region54: #{tpu_custom_call.1} parent=1 // pred_check
      _
    $region55: #{tpu_custom_call.1} parent=1 // pred_check_branch
      %792 = sbr.rel (0) target = $region57
    $region56: #{tpu_custom_call.1} parent=1 // pred_region
      %793 = dma.done [#allocation4], 1024
    $region57: #{tpu_custom_call.1} parent=1 // pred_fallthru
      _
    // Predicated region
    $region58: #{tpu_custom_call.1} parent=1 // pred_check
      _
    $region59: #{tpu_custom_call.1} parent=1 // pred_check_branch
      %795 = sbr.rel (0) target = $region61
    $region60: #{tpu_custom_call.1} parent=1 // pred_region
      %796 = dma.done [#allocation12], 640
    $region61: #{tpu_custom_call.1} parent=1 // pred_fallthru
      _
    %797 = vsyncpa [#allocation3], 1
    %798 = vsyncpa [#allocation6], 1
    %799 = vsyncpa [#allocation9], 1
    %800 = vsyncpa [#allocation4], 1
    %801 = vsyncpa [#allocation12], 1

</llo_original>
